<compile_context>
chip_gen: v7x
topology: tpu7x:2x2x1
jax: 0.10.0
libtpu: 0.0.40
codegen_flags: <defaults>
</compile_context>

<pallas_src>
import functools
import math

import numpy as np
import jax
import jax.numpy as jnp
from jax import lax
from jax.experimental import pallas as pl
from jax.experimental.pallas import tpu as pltpu

# contract dim 0 of lhs with dim 0 of rhs  ==  x^T @ w  (MXU handles transposed LHS natively)
_DN = (((0,), (0,)), ((), ()))


def _embed_kernel(x_ref, w_ref, pos_ref, o_ref, *, tb):
    # x_ref : (TB, L, V)   compute dtype (bf16)
    # w_ref : (L, d_model) compute dtype
    # pos_ref:(V, d_model) f32, Linear bias already folded in
    # o_ref : (TB, V, d_model) output dtype
    w = w_ref[...]
    pos = pos_ref[...]
    for b in range(tb):                                   # small static unroll
        y = lax.dot_general(x_ref[b].astype(w.dtype), w, _DN,
                            preferred_element_type=jnp.float32)   # (V, d) on MXU
        o_ref[b] = (y + pos).astype(o_ref.dtype)


def make_position_embedding(d_model):
    # mirrors DataEmbedding_inverted_own._init_position_embedding exactly
    index_order = [[2, 1, 2], [1, 0, 1], [2, 1, 2]]
    pe = np.zeros((9, d_model), dtype=np.float32)
    for i in range(3):
        for j in range(3):
            pos_val = index_order[i][j] * d_model // 2 + 1
            pos = i * 3 + j
            for k in range(d_model // 2):
                pe[pos, 2 * k] = math.sin(pos_val / 10000 ** (2 * k / d_model))
                pe[pos, 2 * k + 1] = math.cos(pos_val / 10000 ** (2 * k / d_model))
    return jnp.asarray(pe)


def init_params(key, c_in, d_model):
    # deterministic synthetic init (matches nn.Linear default uniform bounds)
    kw, kb = jax.random.split(key)
    bound = 1.0 / math.sqrt(c_in)
    weight = jax.random.uniform(kw, (d_model, c_in), jnp.float32, -bound, bound)
    bias = jax.random.uniform(kb, (d_model,), jnp.float32, -bound, bound)
    pos9 = make_position_embedding(d_model)
    # hoisted out of the per-call path (perf review): build the 37-row table and fold
    # the Linear bias into it once.
    pos37 = jnp.concatenate([pos9, pos9, pos9, pos9, pos9[4:5]], axis=0)   # (37, d)
    pos37b = pos37 + bias[None, :]
    return {"weight": weight, "bias": bias, "pos": pos9, "pos37b": pos37b}


def data_embedding_inverted_own(params, x, x_mark=None, *,
                                compute_dtype=jnp.bfloat16, batch_tile=8):
    """x: (B, L, N), x_mark: (B, L, M) or None.  Returns (B, V, d_model), V = N+M = 37."""
    B, L, N = x.shape
    d_model = params["weight"].shape[0]
    pos37b = params["pos37b"]                                  # (37, d_model) f32
    V = pos37b.shape[0]

    if x_mark is not None:
        assert N + x_mark.shape[2] == V, f"expected {V} variates, got {N + x_mark.shape[2]}"
        # concat along the (contiguous) feature axis + bf16 cast in one fused XLA pass;
        # the permute(0,2,1) of the PyTorch module is done inside the kernel by the MXU.
        x_cat = jnp.concatenate(
            [x.astype(compute_dtype), x_mark.astype(compute_dtype)], axis=-1)   # (B, L, V)
    else:
        assert N == V, f"expected {V} variates, got {N}"
        x_cat = x.astype(compute_dtype)

    wt = params["weight"].T.astype(compute_dtype)              # (L, d_model), tiny

    TB = max(1, min(batch_tile, B))
    grid = (pl.cdiv(B, TB),)                                   # ragged last block is masked

    out = pl.pallas_call(
        functools.partial(_embed_kernel, tb=TB),
        out_shape=jax.ShapeDtypeStruct((B, V, d_model), x.dtype),
        grid=grid,
        in_specs=[
            pl.BlockSpec((TB, L, V), lambda i: (i, 0, 0)),     # x tile, pipelined over batch
            pl.BlockSpec((L, d_model), lambda i: (0, 0)),      # weight, reused every step
            pl.BlockSpec((V, d_model), lambda i: (0, 0)),      # pos+bias, reused every step
        ],
        out_specs=pl.BlockSpec((TB, V, d_model), lambda i: (i, 0, 0)),
        compiler_params=pltpu.CompilerParams(
            dimension_semantics=("parallel",)),                # megacore sharding on v7x
    )(x_cat, wt, pos37b)

    # TODO(synk): nn.Dropout(p=0.1) is identity in eval mode; training-mode stochastic
    # dropout is not applied here.
    return out


# ----------------------------- references (for the self-test) -----------------------------

def _reference_f32(params, x, x_mark):
    # pure-f32 reproduction of the PyTorch forward
    xt = jnp.transpose(x, (0, 2, 1))
    if x_mark is not None:
        xt = jnp.concatenate([xt, jnp.transpose(x_mark, (0, 2, 1))], axis=1)
    y = xt @ params["weight"].T + params["bias"]
    pos9 = params["pos"]
    pos37 = jnp.concatenate([pos9, pos9, pos9, pos9, pos9[4:5]], axis=0)
    return y + pos37[None]


def _reference_bf16(params, x, x_mark, compute_dtype=jnp.bfloat16):
    # same bf16 casts as the kernel path (f32 accumulation)
    xt = jnp.transpose(x, (0, 2, 1)).astype(compute_dtype)
    if x_mark is not None:
        xt = jnp.concatenate(
            [xt, jnp.transpose(x_mark, (0, 2, 1)).astype(compute_dtype)], axis=1)
    w = params["weight"].T.astype(compute_dtype)
    y = jnp.einsum("bvl,ld->bvd", xt, w, preferred_element_type=jnp.float32)
    return (y + params["pos37b"][None]).astype(x.dtype)


if __name__ == "__main__":
    B = 2           # batch
    L = 16          # c_in (lookback length fed to the Linear)
    N = 30          # number of variates
    M = 7           # number of time-mark features  (N + M = 37, required by the module)
    d_model = 32

    key = jax.random.PRNGKey(0)
    kx, km, kp = jax.random.split(key, 3)
    x = jax.random.normal(kx, (B, L, N), jnp.float32)
    x_mark = jax.random.normal(km, (B, L, M), jnp.float32)
    params = init_params(kp, L, d_model)

    fwd = jax.jit(lambda p, a, b: data_embedding_inverted_own(p, a, b))
    out = jax.block_until_ready(fwd(params, x, x_mark))
    assert out.shape == (B, N + M, d_model)

    # exact-path check: same bf16 casts as the kernel
    np.testing.assert_allclose(np.asarray(out),
                               np.asarray(_reference_bf16(params, x, x_mark)),
                               rtol=1e-4, atol=1e-4)
    # module-semantics check: pure f32 reference, tolerance covers bf16 rounding
    np.testing.assert_allclose(np.asarray(out),
                               np.asarray(_reference_f32(params, x, x_mark)),
                               rtol=5e-2, atol=5e-2)

    print("KERNEL_OK")
</pallas_src>

<mosaic_0001>
module attributes {stable_mosaic.version = 11 : i64} {
  func.func @_embed_kernel(%arg0: i32, %arg1: memref<2x16x37xbf16, #tpu.memory_space<vmem>>, %arg2: memref<16x32xbf16, #tpu.memory_space<vmem>>, %arg3: memref<37x32xf32, #tpu.memory_space<vmem>>, %arg4: memref<2x37x32xf32, #tpu.memory_space<vmem>>) attributes {dimension_semantics = [#tpu.dimension_semantics<parallel>], iteration_bounds = array<i64: 1>, scalar_prefetch = 0 : i64, scratch_operands = 0 : i64, tpu.core_type = #tpu.core_type<tc>, window_params = [{transform_indices = @transform_0, window_bounds = array<i64: 2, 16, 37>}, {pipeline_mode = #tpu.pipeline_mode<synchronous>, transform_indices = @transform_1, window_bounds = array<i64: 16, 32>}, {pipeline_mode = #tpu.pipeline_mode<synchronous>, transform_indices = @transform_2, window_bounds = array<i64: 37, 32>}, {transform_indices = @transform_3, window_bounds = array<i64: 2, 37, 32>}]} {
    %c0 = arith.constant 0 : index
    %c0_0 = arith.constant 0 : index
    %0 = vector.load %arg2[%c0, %c0_0] : memref<16x32xbf16, #tpu.memory_space<vmem>>, vector<16x32xbf16>
    %c0_1 = arith.constant 0 : index
    %c0_2 = arith.constant 0 : index
    %1 = vector.load %arg3[%c0_1, %c0_2] : memref<37x32xf32, #tpu.memory_space<vmem>>, vector<37x32xf32>
    %c0_3 = arith.constant 0 : index
    %c0_4 = arith.constant 0 : index
    %c0_5 = arith.constant 0 : index
    %2 = vector.load %arg1[%c0_3, %c0_4, %c0_5] : memref<2x16x37xbf16, #tpu.memory_space<vmem>>, vector<1x16x37xbf16>
    %3 = vector.shape_cast %2 : vector<1x16x37xbf16> to vector<16x37xbf16>
    %cst = arith.constant dense<0.000000e+00> : vector<37x32xf32>
    %4 = tpu.matmul %3, %0, %cst {dimension_numbers = #tpu.dot_dimension_numbers<[0], [0], [1], [1], [0, 1, 1, 1], [], []>} : vector<16x37xbf16>, vector<16x32xbf16>, vector<37x32xf32> -> vector<37x32xf32>
    %5 = arith.addf %4, %1 : vector<37x32xf32>
    %c0_6 = arith.constant 0 : index
    %c0_7 = arith.constant 0 : index
    %c0_8 = arith.constant 0 : index
    %6 = vector.load %arg4[%c0_6, %c0_7, %c0_8] : memref<2x37x32xf32, #tpu.memory_space<vmem>>, vector<1x37x32xf32>
    %7 = vector.shape_cast %6 : vector<1x37x32xf32> to vector<37x32xf32>
    %8 = vector.shape_cast %5 : vector<37x32xf32> to vector<1x37x32xf32>
    tpu.vector_store %arg4[%c0_6, %c0_7, %c0_8], %8 {strides = array<i32>} : memref<2x37x32xf32, #tpu.memory_space<vmem>>, vector<1x37x32xf32>,
    %c1 = arith.constant 1 : index
    %c0_9 = arith.constant 0 : index
    %c0_10 = arith.constant 0 : index
    %9 = vector.load %arg1[%c1, %c0_9, %c0_10] : memref<2x16x37xbf16, #tpu.memory_space<vmem>>, vector<1x16x37xbf16>
    %10 = vector.shape_cast %9 : vector<1x16x37xbf16> to vector<16x37xbf16>
    %cst_11 = arith.constant dense<0.000000e+00> : vector<37x32xf32>
    %11 = tpu.matmul %10, %0, %cst_11 {dimension_numbers = #tpu.dot_dimension_numbers<[0], [0], [1], [1], [0, 1, 1, 1], [], []>} : vector<16x37xbf16>, vector<16x32xbf16>, vector<37x32xf32> -> vector<37x32xf32>
    %12 = arith.addf %11, %1 : vector<37x32xf32>
    %c1_12 = arith.constant 1 : index
    %c0_13 = arith.constant 0 : index
    %c0_14 = arith.constant 0 : index
    %13 = vector.load %arg4[%c1_12, %c0_13, %c0_14] : memref<2x37x32xf32, #tpu.memory_space<vmem>>, vector<1x37x32xf32>
    %14 = vector.shape_cast %13 : vector<1x37x32xf32> to vector<37x32xf32>
    %15 = vector.shape_cast %12 : vector<37x32xf32> to vector<1x37x32xf32>
    tpu.vector_store %arg4[%c1_12, %c0_13, %c0_14], %15 {strides = array<i32>} : memref<2x37x32xf32, #tpu.memory_space<vmem>>, vector<1x37x32xf32>,
    return
  }
  func.func @transform_0(%arg0: i32) -> (i32, i32, i32) {
    %c0_i32 = arith.constant 0 : i32
    %c0_i32_0 = arith.constant 0 : i32
    %c0_i32_1 = arith.constant 0 : i32
    return %arg0, %c0_i32, %c0_i32_0 : i32, i32, i32
  }
  func.func @transform_1(%arg0: i32) -> (i32, i32) {
    %c0_i32 = arith.constant 0 : i32
    %c0_i32_0 = arith.constant 0 : i32
    %c0_i32_1 = arith.constant 0 : i32
    return %c0_i32, %c0_i32_0 : i32, i32
  }
  func.func @transform_2(%arg0: i32) -> (i32, i32) {
    %c0_i32 = arith.constant 0 : i32
    %c0_i32_0 = arith.constant 0 : i32
    %c0_i32_1 = arith.constant 0 : i32
    return %c0_i32, %c0_i32_0 : i32, i32
  }
  func.func @transform_3(%arg0: i32) -> (i32, i32, i32) {
    %c0_i32 = arith.constant 0 : i32
    %c0_i32_0 = arith.constant 0 : i32
    %c0_i32_1 = arith.constant 0 : i32
    return %arg0, %c0_i32, %c0_i32_0 : i32, i32, i32
  }
}

</mosaic_0001>

<llo_original>
// kernel: _lambda_.1
$region0: #{_lambda_.1}
  #allocation0 [shape = 'u32[]', space=smem, size = 0x4, offset = 0x4, fixed_abs, tag = 'smem constant byte address 0x4 - core index']
  #allocation1 [shape = 'u32[144,128]{1,0:T(1,128)}', space=vmem, size = 0x12000, scoped, tag = 'internal scratch']
  %s0 = inlined_call_operand.vmem [shape: bf16[2,16,37], index: 0, kind: input, shape index: {}]
  %s1 = inlined_call_operand.vmem [shape: bf16[16,32], index: 1, kind: input, shape index: {}]
  %s2 = inlined_call_operand.vmem [shape: f32[37,32], index: 2, kind: input, shape index: {}]
  %s3 = inlined_call_operand.vmem [shape: f32[2,37,32], index: 3, kind: output, shape index: {}]
  %s4 = sld [smem:[#allocation0]]
  $region22: #{_lambda_.1} parent=0
    _
  %s6 = ssub.s32 1, %s4
  %s7 = scalar_select 0, %s6, %s4
  // Predicated region
  $region2: #{_lambda_.1} parent=0 // pred_check
    _
  $region3: #{_lambda_.1} parent=0 // pred_check_branch
    %9 = sbr.rel (0) target = $region5
  $region4: #{_lambda_.1} parent=0 // pred_region
    _
  $region5: #{_lambda_.1} parent=0 // pred_fallthru
    _
  // Predicated region
  $region6: #{_lambda_.1} parent=0 // pred_check
    _
  $region7: #{_lambda_.1} parent=0 // pred_check_branch
    %11 = sbr.rel (0) target = $region9
  $region8: #{_lambda_.1} parent=0 // pred_region
    _
  $region9: #{_lambda_.1} parent=0 // pred_fallthru
    _
  // Predicated region
  $region10: #{_lambda_.1} parent=0 // pred_check
    _
  $region11: #{_lambda_.1} parent=0 // pred_check_branch
    %13 = sbr.rel (0) target = $region13
  $region12: #{_lambda_.1} parent=0 // pred_region
    _
  $region13: #{_lambda_.1} parent=0 // pred_fallthru
    _
  %v15 = vld [vmem:[%s1] sm:$0xf]
  %v16 = vld [vmem:[%s1 + $0x4] sm:$0xf]
  %v17 = vld [vmem:[%s2] sm:$0xff]
  %v18 = vld [vmem:[%s2 + $0x8] sm:$0xff]
  %v19 = vld [vmem:[%s2 + $0x10] sm:$0xff]
  %v20 = vld [vmem:[%s2 + $0x18] sm:$0xff]
  %v21 = vld [vmem:[%s2 + $0x20] sm:$0x1f]
  %v22 = vld [vmem:[%s0] sm:$0xf]
  %v23 = vld [vmem:[%s0 + $0x4] sm:$0xf]
  %v26 = vunpack.c.l.b16 %v22
  %v27 = vunpack.c.l.b16 %v23
  %v28 = vpack.c.b16 %v27, %v26
  %30 = vxpose.xlu0.c.b16.start [1/8] %v28, 128
  %31 = vxpose.xlu0.c.b16.cont [2/8] 0, 128
  %32 = vxpose.xlu0.c.b16.cont [3/8] 0, 128
  %33 = vxpose.xlu0.c.b16.cont [4/8] 0, 128
  %34 = vxpose.xlu0.c.b16.cont [5/8] 0, 128
  %35 = vxpose.xlu0.c.b16.cont [6/8] 0, 128
  %36 = vxpose.xlu0.c.b16.cont [7/8] 0, 128
  %37 = vxpose.xlu0.c.b16.end [8/8] 0, 128
  %v38 = vpop.trf.xlu0
  %v39 = vpop.trf.xlu0
  %v40 = vpop.trf.xlu0
  %v41 = vpop.trf.xlu0
  %v42 = vpop.trf.xlu0
  %v43 = vpop.trf.xlu0
  %v44 = vpop.trf.xlu0
  %v45 = vpop.trf.xlu0
  %v48 = vunpack.c.l.b16 %v15
  %v49 = vunpack.c.l.b16 %v16
  %v50 = vpack.c.b16 %v49, %v48
  %vm52 = vcmask 130048
  %v54 = vsel %vm52, %v38, 0
  %v57 = vsel %vm52, %v39, 0
  %v60 = vsel %vm52, %v40, 0
  %62 = vmatprep.subr.bf16.mxu0 0
  %63 = vmatpush1.bf16.msra.mxu0 %v50
  %64 = vmatprep.subr.bf16.mxu0 0
  %65 = vmatpush1.bf16.msra.mxu0 0
  %66 = vmatprep.subr.bf16.mxu0 0
  %67 = vmatpush1.bf16.msra.mxu0 0
  %68 = vmatprep.subr.bf16.mxu0 0
  %69 = vmatpush1.bf16.msra.mxu0 0
  %70 = vmatprep.subr.bf16.mxu0 0
  %71 = vmatpush1.bf16.msra.mxu0 0
  %72 = vmatprep.subr.bf16.mxu0 0
  %73 = vmatpush1.bf16.msra.mxu0 0
  %74 = vmatprep.subr.bf16.mxu0 0
  %75 = vmatpush1.bf16.msra.mxu0 0
  %76 = vmatprep.subr.bf16.mxu0 0
  %77 = vmatpush1.bf16.msra.mxu0 0
  %78 = vmatprep.subr.bf16.mxu0 0
  %79 = vmatpush1.bf16.msra.mxu0 0
  %80 = vmatprep.subr.bf16.mxu0 0
  %81 = vmatpush1.bf16.msra.mxu0 0
  %82 = vmatprep.subr.bf16.mxu0 0
  %83 = vmatpush1.bf16.msra.mxu0 0
  %84 = vmatprep.subr.bf16.mxu0 0
  %85 = vmatpush1.bf16.msra.mxu0 0
  %86 = vmatprep.subr.bf16.mxu0 0
  %87 = vmatpush1.bf16.msra.mxu0 0
  %88 = vmatprep.subr.bf16.mxu0 0
  %89 = vmatpush1.bf16.msra.mxu0 0
  %90 = vmatprep.subr.bf16.mxu0 0
  %91 = vmatpush1.bf16.msra.mxu0 0
  %92 = vmatprep.subr.bf16.mxu0 0
  %93 = vmatpush1.bf16.msra.mxu0 0
  %94 = vmatprep.mubr.bf16.mxu0 0
  %95 = vmatmul.mubr.bf16.gmra.mrb[0].mxu0 %v54
  %v96 = vpop.f32.mrb[0].mxu0
  %v97 = vadd.f32 %v17, %v96
  %v98 = vpop.f32.mrb[0].mxu0
  %v99 = vpop.f32.mrb[0].mxu0
  %v100 = vadd.f32 %v18, %v99
  %v101 = vpop.f32.mrb[0].mxu0
  %102 = vmatprep.mubr.bf16.mxu0 0
  %103 = vmatmul.mubr.bf16.gmra.mrb[0].mxu0 %v57
  %v104 = vpop.f32.mrb[0].mxu0
  %v105 = vadd.f32 %v19, %v104
  %v106 = vpop.f32.mrb[0].mxu0
  %v107 = vpop.f32.mrb[0].mxu0
  %v108 = vadd.f32 %v20, %v107
  %v109 = vpop.f32.mrb[0].mxu0
  %110 = vmatprep.mubr.bf16.mxu0 0
  %111 = vmatmul.mubr.bf16.gmra.mrb[0].mxu0 %v60
  %v112 = vpop.f32.mrb[0].mxu0
  %v113 = vadd.f32 %v21, %v112
  %v114 = vpop.f32.mrb[0].mxu0
  %v115 = vpop.f32.mrb[0].mxu0
  %v116 = vpop.f32.mrb[0].mxu0
  %117 = vdwg.mxu0
  %vm118 = vcmask 261120
  %119 = vst.msk [vmem:[%s3] sm:$0xff] %vm118, %v97
  %120 = vst.msk [vmem:[%s3 + $0x8] sm:$0xff] %vm118, %v100
  %121 = vst.msk [vmem:[%s3 + $0x10] sm:$0xff] %vm118, %v105
  %122 = vst.msk [vmem:[%s3 + $0x18] sm:$0xff] %vm118, %v108
  %vm123 = vcmask 258048
  %124 = vst.msk [vmem:[%s3 + $0x20] sm:$0x1f] %vm123, %v113
  %s125 = scalar_lea.vmem %s0, 8
  %v126 = vld [vmem:[%s125] sm:$0xf]
  %v127 = vld [vmem:[%s125 + $0x4] sm:$0xf]
  %v130 = vunpack.c.l.b16 %v126
  %v131 = vunpack.c.l.b16 %v127
  %v132 = vpack.c.b16 %v131, %v130
  %134 = vxpose.xlu0.c.b16.start [1/8] %v132, 128
  %135 = vxpose.xlu0.c.b16.cont [2/8] 0, 128
  %136 = vxpose.xlu0.c.b16.cont [3/8] 0, 128
  %137 = vxpose.xlu0.c.b16.cont [4/8] 0, 128
  %138 = vxpose.xlu0.c.b16.cont [5/8] 0, 128
  %139 = vxpose.xlu0.c.b16.cont [6/8] 0, 128
  %140 = vxpose.xlu0.c.b16.cont [7/8] 0, 128
  %141 = vxpose.xlu0.c.b16.end [8/8] 0, 128
  %v142 = vpop.trf.xlu0
  %v143 = vpop.trf.xlu0
  %v144 = vpop.trf.xlu0
  %v145 = vpop.trf.xlu0
  %v146 = vpop.trf.xlu0
  %v147 = vpop.trf.xlu0
  %v148 = vpop.trf.xlu0
  %v149 = vpop.trf.xlu0
  %v151 = vsel %vm52, %v142, 0
  %v154 = vsel %vm52, %v143, 0
  %v157 = vsel %vm52, %v144, 0
  %159 = vmatprep.subr.bf16.mxu0 0
  %160 = vmatpush1.bf16.msra.mxu0 %v50
  %161 = vmatprep.subr.bf16.mxu0 0
  %162 = vmatpush1.bf16.msra.mxu0 0
  %163 = vmatprep.subr.bf16.mxu0 0
  %164 = vmatpush1.bf16.msra.mxu0 0
  %165 = vmatprep.subr.bf16.mxu0 0
  %166 = vmatpush1.bf16.msra.mxu0 0
  %167 = vmatprep.subr.bf16.mxu0 0
  %168 = vmatpush1.bf16.msra.mxu0 0
  %169 = vmatprep.subr.bf16.mxu0 0
  %170 = vmatpush1.bf16.msra.mxu0 0
  %171 = vmatprep.subr.bf16.mxu0 0
  %172 = vmatpush1.bf16.msra.mxu0 0
  %173 = vmatprep.subr.bf16.mxu0 0
  %174 = vmatpush1.bf16.msra.mxu0 0
  %175 = vmatprep.subr.bf16.mxu0 0
  %176 = vmatpush1.bf16.msra.mxu0 0
  %177 = vmatprep.subr.bf16.mxu0 0
  %178 = vmatpush1.bf16.msra.mxu0 0
  %179 = vmatprep.subr.bf16.mxu0 0
  %180 = vmatpush1.bf16.msra.mxu0 0
  %181 = vmatprep.subr.bf16.mxu0 0
  %182 = vmatpush1.bf16.msra.mxu0 0
  %183 = vmatprep.subr.bf16.mxu0 0
  %184 = vmatpush1.bf16.msra.mxu0 0
  %185 = vmatprep.subr.bf16.mxu0 0
  %186 = vmatpush1.bf16.msra.mxu0 0
  %187 = vmatprep.subr.bf16.mxu0 0
  %188 = vmatpush1.bf16.msra.mxu0 0
  %189 = vmatprep.subr.bf16.mxu0 0
  %190 = vmatpush1.bf16.msra.mxu0 0
  %191 = vmatprep.mubr.bf16.mxu0 0
  %192 = vmatmul.mubr.bf16.gmra.mrb[0].mxu0 %v151
  %v193 = vpop.f32.mrb[0].mxu0
  %v194 = vadd.f32 %v17, %v193
  %v195 = vpop.f32.mrb[0].mxu0
  %v196 = vpop.f32.mrb[0].mxu0
  %v197 = vadd.f32 %v18, %v196
  %v198 = vpop.f32.mrb[0].mxu0
  %199 = vmatprep.mubr.bf16.mxu0 0
  %200 = vmatmul.mubr.bf16.gmra.mrb[0].mxu0 %v154
  %v201 = vpop.f32.mrb[0].mxu0
  %v202 = vadd.f32 %v19, %v201
  %v203 = vpop.f32.mrb[0].mxu0
  %v204 = vpop.f32.mrb[0].mxu0
  %v205 = vadd.f32 %v20, %v204
  %v206 = vpop.f32.mrb[0].mxu0
  %207 = vmatprep.mubr.bf16.mxu0 0
  %208 = vmatmul.mubr.bf16.gmra.mrb[0].mxu0 %v157
  %v209 = vpop.f32.mrb[0].mxu0
  %v210 = vadd.f32 %v21, %v209
  %v211 = vpop.f32.mrb[0].mxu0
  %v212 = vpop.f32.mrb[0].mxu0
  %v213 = vpop.f32.mrb[0].mxu0
  %214 = vdwg.mxu0
  %s215 = scalar_lea.vmem %s3, 40
  %216 = vst.msk [vmem:[%s215] sm:$0xff] %vm118, %v194
  %217 = vst.msk [vmem:[%s215 + $0x8] sm:$0xff] %vm118, %v197
  %218 = vst.msk [vmem:[%s215 + $0x10] sm:$0xff] %vm118, %v202
  %219 = vst.msk [vmem:[%s215 + $0x18] sm:$0xff] %vm118, %v205
  %220 = vst.msk [vmem:[%s215 + $0x20] sm:$0x1f] %vm123, %v210
  // Predicated region
  $region14: #{_lambda_.1} parent=0 // pred_check
    _
  $region15: #{_lambda_.1} parent=0 // pred_check_branch
    %222 = sbr.rel (0) target = $region17
  $region16: #{_lambda_.1} parent=0 // pred_region
    _
  $region17: #{_lambda_.1} parent=0 // pred_fallthru
    _
  // Predicated region
  $region18: #{_lambda_.1} parent=0 // pred_check
    _
  $region19: #{_lambda_.1} parent=0 // pred_check_branch
    %224 = sbr.rel (0) target = $region21
  $region20: #{_lambda_.1} parent=0 // pred_region
    _
  $region21: #{_lambda_.1} parent=0 // pred_fallthru
    _

</llo_original>
